<compile_context>
chip_gen: v6e
topology: v6e:2x2x1
jax: 0.10.0
libtpu: 0.0.40
codegen_flags: <defaults>
</compile_context>

<pallas_src>
import math

import jax
import jax.numpy as jnp
from jax.experimental import pallas as pl
from jax.experimental.pallas import tpu as pltpu


def _gelu_tanh(x):
    # Matches torch.nn.GELU(approximate='tanh'); kept in f32.
    c = math.sqrt(2.0 / math.pi)
    return 0.5 * x * (1.0 + jnp.tanh(c * (x + 0.044715 * x * x * x)))


def _round_up(v, m):
    return ((v + m - 1) // m) * m


def _vmem_usage(tm, C, th):
    """Approximate VMEM working set (bytes) for one grid step."""
    return int(
        2 * tm * C * 4        # x tile, f32, double-buffered
        + 2 * tm * C * 4      # output tile, f32, double-buffered
        + 2 * C * th * 2      # w_fc tile, bf16, double-buffered
        + 2 * th * C * 2      # w_pj tile, bf16, double-buffered
        + tm * th * 4         # f32 hidden slab (GELU intermediate)
        + 2 * (th + C) * 4    # biases
    )


def _vmem_budget(user_limit=None):
    """Per-chip VMEM limit: 56 MiB on v7x (64 MiB physical), 100 MiB otherwise."""
    if user_limit is not None:
        return int(user_limit)
    cap = None
    try:
        info = pltpu.get_tpu_info()
        cap = getattr(info, "vmem_capacity_bytes", None)
    except Exception:
        cap = None
    if cap is None:
        cap = 64 * 1024 * 1024  # unknown -> assume the smallest (v7x-like)
    if cap <= 64 * 1024 * 1024:
        return 56 * 1024 * 1024
    return 100 * 1024 * 1024


def _choose_tm(M, tile_m, C, H, budget):
    """Row-tile size: big (amortize weight streaming), VMEM-safe, >=2 tiles."""
    limit = int(budget * 0.9)
    Mp8 = _round_up(max(M, 1), 8)
    tm = min(_round_up(tile_m, 8), Mp8)

    # Shrink tm if even the narrowest hidden tile would not fit the budget.
    min_th = 128 if (H >= 128 and H % 128 == 0) else H
    while tm > 8 and _vmem_usage(tm, C, min_th) > limit:
        tm = max(8, _round_up(tm // 2, 8))

    # Ensure the "parallel" M axis has at least 2 tiles (v7x: two TensorCores).
    if Mp8 // tm < 2 and Mp8 >= 16:
        tm = _round_up((Mp8 + 1) // 2, 8)

    # Prefer a tm that divides the 8-rounded row count so no jnp.pad / slice
    # pass over the activations is needed; don't shrink below half the target.
    if Mp8 % tm != 0:
        lo = max(tm // 2, 8)
        for cand in range(tm, lo - 1, -8):
            if Mp8 % cand == 0:
                tm = cand
                break

    Mp = _round_up(Mp8, tm)
    return tm, Mp


def _choose_th(H, C, tm, budget):
    """Largest 128-aligned (256-preferred) divisor of H fitting the budget."""
    limit = int(budget * 0.9)
    cands = [d for d in range(128, H + 1, 128) if H % d == 0]
    if not cands:
        return H  # tiny / non-128-aligned hidden dim: single reduction step
    fitting = [d for d in cands if _vmem_usage(tm, C, d) <= limit]
    if not fitting:
        return cands[0]
    best = max(fitting)
    # Prefer a 256-aligned tile (v6e/v7x 2x256 MXU) if it is at least half as wide.
    fit256 = [d for d in fitting if d % 256 == 0]
    if fit256 and 2 * max(fit256) >= best:
        best = max(fit256)
    return best


def mlp_kernel(x_ref, w_fc_ref, b_fc_ref, w_pj_ref, b_pj_ref, o_ref):
    # x_ref:   (tm, C)  f32 (resident over h)   w_fc_ref: (C, th) bf16
    # b_fc_ref:(1, th)  f32                     w_pj_ref: (th, C) bf16
    # b_pj_ref:(1, C)   f32                     o_ref:    (tm, C) f32 (resident over h)
    h_idx = pl.program_id(1)

    @pl.when(h_idx == 0)
    def _():
        o_ref[...] = jnp.zeros_like(o_ref)

    # c_fc partial: (tm, C) @ (C, th) -> (tm, th); bf16 operands, f32 MXU accumulate.
    x_bf = x_ref[...].astype(jnp.bfloat16)
    h = jnp.dot(x_bf, w_fc_ref[...], preferred_element_type=jnp.float32)
    h = h + b_fc_ref[...]          # f32 bias add
    h = _gelu_tanh(h)              # f32 tanh-GELU on just this th-wide slab

    # c_proj partial accumulated directly into the resident f32 output block.
    o_ref[...] += jnp.dot(h.astype(jnp.bfloat16), w_pj_ref[...],
                          preferred_element_type=jnp.float32)

    @pl.when(h_idx == pl.num_programs(1) - 1)
    def _():
        o_ref[...] = o_ref[...] + b_pj_ref[...]


def mlp_forward(x, w_fc, b_fc, w_pj, b_pj, *, tile_m=1024, tile_h=None,
                vmem_limit_bytes=None):
    """Fused GPT-2 MLP.

    x: (B, T, C) float32.  w_fc: (C, 4C), w_pj: (4C, C) — ideally pre-cast to
    bf16 once by the caller; b_fc: (4C,), b_pj: (C,).  Returns (B, T, C) f32.
    """
    B, T, C = x.shape
    H = w_fc.shape[1]
    M = B * T

    budget = _vmem_budget(vmem_limit_bytes)
    tm, Mp = _choose_tm(M, tile_m, C, H, budget)
    if tile_h is not None:
        assert H % tile_h == 0, "tile_h must divide the hidden dimension"
        th = tile_h
    else:
        th = _choose_th(H, C, tm, budget)

    x2 = x.reshape(M, C)
    if Mp != M:
        x2 = jnp.pad(x2, ((0, Mp - M), (0, 0)))

    # Weights in bf16 (native MXU rate, half the HBM bytes).  If the caller
    # already passes bf16 (recommended: cast once, outside the per-call path)
    # these are no-ops.
    w_fc_b = w_fc if w_fc.dtype == jnp.bfloat16 else w_fc.astype(jnp.bfloat16)
    w_pj_b = w_pj if w_pj.dtype == jnp.bfloat16 else w_pj.astype(jnp.bfloat16)
    b_fc2 = b_fc.reshape(1, H).astype(jnp.float32)
    b_pj2 = b_pj.reshape(1, C).astype(jnp.float32)

    n_mtiles = Mp // tm
    grid = (n_mtiles, H // th)

    cost = pl.CostEstimate(
        flops=4 * Mp * C * H,              # two matmuls, 2*M*C*H flops each
        transcendentals=Mp * H,            # tanh inside GELU
        bytes_accessed=(Mp * C * 4                      # x (f32) read
                        + n_mtiles * (C * H * 2 + H * C * 2)  # weights re-streamed per M tile
                        + n_mtiles * (H + C) * 4        # biases per M tile
                        + Mp * C * 4),                  # output (f32) write
    )

    out = pl.pallas_call(
        mlp_kernel,
        out_shape=jax.ShapeDtypeStruct((Mp, C), jnp.float32),
        grid_spec=pltpu.PrefetchScalarGridSpec(
            num_scalar_prefetch=0,
            grid=grid,
            in_specs=[
                pl.BlockSpec((tm, C), lambda i, h: (i, 0)),   # x tile (resident over h)
                pl.BlockSpec((C, th), lambda i, h: (0, h)),   # w_fc streamed over H
                pl.BlockSpec((1, th), lambda i, h: (0, h)),   # b_fc slab
                pl.BlockSpec((th, C), lambda i, h: (h, 0)),   # w_pj streamed over H
                pl.BlockSpec((1, C), lambda i, h: (0, 0)),    # b_pj (tiny, constant)
            ],
            out_specs=pl.BlockSpec((tm, C), lambda i, h: (i, 0)),
        ),
        compiler_params=pltpu.CompilerParams(
            dimension_semantics=("parallel", "arbitrary"),
            vmem_limit_bytes=budget,
        ),
        cost_estimate=cost,
    )(x2, w_fc_b, b_fc2, w_pj_b, b_pj2)

    if Mp != M:
        out = out[:M]
    return out.reshape(B, T, C)


def _reference_mlp_f32(x, w_fc, b_fc, w_pj, b_pj):
    B, T, C = x.shape
    h = x.reshape(-1, C) @ w_fc + b_fc
    g = 0.5 * h * (1.0 + jnp.tanh(
        math.sqrt(2.0 / math.pi) * (h + 0.044715 * h ** 3)))
    return (g @ w_pj + b_pj).reshape(B, T, C)


if __name__ == "__main__":
    # Small GPT-2-like config: n_embed=64, hidden=4*64=256.
    C = 64
    H = 4 * C

    key = jax.random.PRNGKey(0)
    kx, k1, k2, k3, k4, kx2 = jax.random.split(key, 6)

    # Deterministic synthetic params, stored as (in, out), i.e. PyTorch weight.T.
    w_fc = jax.random.normal(k1, (C, H), dtype=jnp.float32) * 0.02
    b_fc = jax.random.normal(k2, (H,), dtype=jnp.float32) * 0.02
    w_pj = jax.random.normal(k3, (H, C), dtype=jnp.float32) * 0.02
    b_pj = jax.random.normal(k4, (C,), dtype=jnp.float32) * 0.02

    # Pre-cast weights to bf16 ONCE (outside the per-call path), per the review.
    w_fc_bf = w_fc.astype(jnp.bfloat16)
    w_pj_bf = w_pj.astype(jnp.bfloat16)

    # Case 1: batch=2, seq=8 -> M=16 rows; tile_h=128 forces a 2-step hidden
    # reduction and the M-tile logic yields 2 "parallel" tiles, so the
    # init / accumulate / finalize path and multi-tile M axis are exercised.
    B, T = 2, 8
    x1 = jax.random.normal(kx, (B, T, C), dtype=jnp.float32)
    y1 = mlp_forward(x1, w_fc_bf, b_fc, w_pj_bf, b_pj, tile_h=128)
    jax.block_until_ready(y1)
    y1_auto = mlp_forward(x1, w_fc_bf, b_fc, w_pj_bf, b_pj)   # auto tiling
    jax.block_until_ready(y1_auto)
    y1_ref = _reference_mlp_f32(x1, w_fc, b_fc, w_pj, b_pj)

    # Case 2: batch=2, seq=9 -> ragged M=18 rows; exercises the padding path.
    B2, T2 = 2, 9
    x2 = jax.random.normal(kx2, (B2, T2, C), dtype=jnp.float32)
    y2 = mlp_forward(x2, w_fc_bf, b_fc, w_pj_bf, b_pj)
    jax.block_until_ready(y2)
    y2_ref = _reference_mlp_f32(x2, w_fc, b_fc, w_pj, b_pj)

    # bf16 matmul inputs => relaxed tolerance vs the f32 PyTorch-equivalent math.
    assert jnp.allclose(y1, y1_ref, atol=3e-3, rtol=3e-2), "mismatch (tiled H)"
    assert jnp.allclose(y1_auto, y1_ref, atol=3e-3, rtol=3e-2), "mismatch (auto tiling)"
    assert jnp.allclose(y1, y1_auto, atol=1e-4, rtol=1e-3), "tiling-dependent result"
    assert jnp.allclose(y2, y2_ref, atol=3e-3, rtol=3e-2), "mismatch (ragged M)"

    print("KERNEL_OK")
</pallas_src>

<mosaic_0001>
module attributes {stable_mosaic.version = 11 : i64} {
  func.func @mlp_kernel(%arg0: i32, %arg1: i32, %arg2: memref<8x64xf32, #tpu.memory_space<vmem>>, %arg3: memref<64x128xbf16, #tpu.memory_space<vmem>>, %arg4: memref<1x128xf32, #tpu.memory_space<vmem>>, %arg5: memref<128x64xbf16, #tpu.memory_space<vmem>>, %arg6: memref<1x64xf32, #tpu.memory_space<vmem>>, %arg7: memref<8x64xf32, #tpu.memory_space<vmem>>) attributes {dimension_semantics = [#tpu.dimension_semantics<parallel>, #tpu.dimension_semantics<arbitrary>], iteration_bounds = array<i64: 2, 2>, scalar_prefetch = 0 : i64, scratch_operands = 0 : i64, tpu.core_type = #tpu.core_type<tc>, window_params = [{transform_indices = @transform_0, window_bounds = array<i64: 8, 64>}, {transform_indices = @transform_1, window_bounds = array<i64: 64, 128>}, {transform_indices = @transform_2, window_bounds = array<i64: 1, 128>}, {transform_indices = @transform_3, window_bounds = array<i64: 128, 64>}, {pipeline_mode = #tpu.pipeline_mode<synchronous>, transform_indices = @transform_4, window_bounds = array<i64: 1, 64>}, {transform_indices = @transform_5, window_bounds = array<i64: 8, 64>}]} {
    %c0_i32 = arith.constant 0 : i32
    %0 = arith.cmpi eq, %arg1, %c0_i32 : i32
    %1 = arith.extui %0 : i1 to i32
    %c0_i32_0 = arith.constant 0 : i32
    %2 = arith.cmpi ne, %1, %c0_i32_0 : i32
    scf.if %2 {
      %cst_18 = arith.constant 0.000000e+00 : f32
      %32 = vector.broadcast %cst_18 : f32 to vector<8x64xf32>
      %c0_19 = arith.constant 0 : index
      %c0_20 = arith.constant 0 : index
      %33 = vector.load %arg7[%c0_19, %c0_20] : memref<8x64xf32, #tpu.memory_space<vmem>>, vector<8x64xf32>
      tpu.vector_store %arg7[%c0_19, %c0_20], %32 {strides = array<i32>} : memref<8x64xf32, #tpu.memory_space<vmem>>, vector<8x64xf32>,
    } else {
    }
    %c0 = arith.constant 0 : index
    %c0_1 = arith.constant 0 : index
    %3 = vector.load %arg2[%c0, %c0_1] : memref<8x64xf32, #tpu.memory_space<vmem>>, vector<8x64xf32>
    %4 = arith.truncf %3 : vector<8x64xf32> to vector<8x64xbf16>
    %c0_2 = arith.constant 0 : index
    %c0_3 = arith.constant 0 : index
    %5 = vector.load %arg3[%c0_2, %c0_3] : memref<64x128xbf16, #tpu.memory_space<vmem>>, vector<64x128xbf16>
    %cst = arith.constant dense<0.000000e+00> : vector<8x128xf32>
    %6 = tpu.matmul %4, %5, %cst {dimension_numbers = #tpu.dot_dimension_numbers<[1], [0], [0], [1], [0, 0, 1, 1], [], []>} : vector<8x64xbf16>, vector<64x128xbf16>, vector<8x128xf32> -> vector<8x128xf32>
    %c0_4 = arith.constant 0 : index
    %c0_5 = arith.constant 0 : index
    %7 = vector.load %arg4[%c0_4, %c0_5] : memref<1x128xf32, #tpu.memory_space<vmem>>, vector<1x128xf32>
    %8 = vector.broadcast %7 : vector<1x128xf32> to vector<8x128xf32>
    %9 = arith.addf %6, %8 : vector<8x128xf32>
    %cst_6 = arith.constant 5.000000e-01 : f32
    %10 = vector.broadcast %cst_6 : f32 to vector<8x128xf32>
    %11 = arith.mulf %10, %9 : vector<8x128xf32>
    %cst_7 = arith.constant 4.471500e-02 : f32
    %12 = vector.broadcast %cst_7 : f32 to vector<8x128xf32>
    %13 = arith.mulf %12, %9 : vector<8x128xf32>
    %14 = arith.mulf %13, %9 : vector<8x128xf32>
    %15 = arith.mulf %14, %9 : vector<8x128xf32>
    %16 = arith.addf %9, %15 : vector<8x128xf32>
    %cst_8 = arith.constant 0.797884583 : f32
    %17 = vector.broadcast %cst_8 : f32 to vector<8x128xf32>
    %18 = arith.mulf %17, %16 : vector<8x128xf32>
    %19 = math.tanh %18 : vector<8x128xf32>
    %cst_9 = arith.constant 1.000000e+00 : f32
    %20 = vector.broadcast %cst_9 : f32 to vector<8x128xf32>
    %21 = arith.addf %20, %19 : vector<8x128xf32>
    %22 = arith.mulf %11, %21 : vector<8x128xf32>
    %c0_10 = arith.constant 0 : index
    %c0_11 = arith.constant 0 : index
    %23 = vector.load %arg7[%c0_10, %c0_11] : memref<8x64xf32, #tpu.memory_space<vmem>>, vector<8x64xf32>
    %24 = arith.truncf %22 : vector<8x128xf32> to vector<8x128xbf16>
    %c0_12 = arith.constant 0 : index
    %c0_13 = arith.constant 0 : index
    %25 = vector.load %arg5[%c0_12, %c0_13] : memref<128x64xbf16, #tpu.memory_space<vmem>>, vector<128x64xbf16>
    %cst_14 = arith.constant dense<0.000000e+00> : vector<8x64xf32>
    %26 = tpu.matmul %24, %25, %cst_14 {dimension_numbers = #tpu.dot_dimension_numbers<[1], [0], [0], [1], [0, 0, 1, 1], [], []>} : vector<8x128xbf16>, vector<128x64xbf16>, vector<8x64xf32> -> vector<8x64xf32>
    %27 = arith.addf %23, %26 : vector<8x64xf32>
    %c0_15 = arith.constant 0 : index
    %c0_16 = arith.constant 0 : index
    %28 = vector.load %arg7[%c0_15, %c0_16] : memref<8x64xf32, #tpu.memory_space<vmem>>, vector<8x64xf32>
    tpu.vector_store %arg7[%c0_15, %c0_16], %27 {strides = array<i32>} : memref<8x64xf32, #tpu.memory_space<vmem>>, vector<8x64xf32>,
    %c1_i32 = arith.constant 1 : i32
    %29 = arith.cmpi eq, %arg1, %c1_i32 : i32
    %30 = arith.extui %29 : i1 to i32
    %c0_i32_17 = arith.constant 0 : i32
    %31 = arith.cmpi ne, %30, %c0_i32_17 : i32
    scf.if %31 {
      %c0_18 = arith.constant 0 : index
      %c0_19 = arith.constant 0 : index
      %32 = vector.load %arg7[%c0_18, %c0_19] : memref<8x64xf32, #tpu.memory_space<vmem>>, vector<8x64xf32>
      %c0_20 = arith.constant 0 : index
      %c0_21 = arith.constant 0 : index
      %33 = vector.load %arg6[%c0_20, %c0_21] : memref<1x64xf32, #tpu.memory_space<vmem>>, vector<1x64xf32>
      %34 = vector.broadcast %33 : vector<1x64xf32> to vector<8x64xf32>
      %35 = arith.addf %32, %34 : vector<8x64xf32>
      %c0_22 = arith.constant 0 : index
      %c0_23 = arith.constant 0 : index
      %36 = vector.load %arg7[%c0_22, %c0_23] : memref<8x64xf32, #tpu.memory_space<vmem>>, vector<8x64xf32>
      tpu.vector_store %arg7[%c0_22, %c0_23], %35 {strides = array<i32>} : memref<8x64xf32, #tpu.memory_space<vmem>>, vector<8x64xf32>,
    } else {
    }
    return
  }
  func.func @transform_0(%arg0: i32, %arg1: i32) -> (i32, i32) {
    %c0_i32 = arith.constant 0 : i32
    %c0_i32_0 = arith.constant 0 : i32
    return %arg0, %c0_i32 : i32, i32
  }
  func.func @transform_1(%arg0: i32, %arg1: i32) -> (i32, i32) {
    %c0_i32 = arith.constant 0 : i32
    %c0_i32_0 = arith.constant 0 : i32
    return %c0_i32, %arg1 : i32, i32
  }
  func.func @transform_2(%arg0: i32, %arg1: i32) -> (i32, i32) {
    %c0_i32 = arith.constant 0 : i32
    %c0_i32_0 = arith.constant 0 : i32
    return %c0_i32, %arg1 : i32, i32
  }
  func.func @transform_3(%arg0: i32, %arg1: i32) -> (i32, i32) {
    %c0_i32 = arith.constant 0 : i32
    %c0_i32_0 = arith.constant 0 : i32
    return %arg1, %c0_i32 : i32, i32
  }
  func.func @transform_4(%arg0: i32, %arg1: i32) -> (i32, i32) {
    %c0_i32 = arith.constant 0 : i32
    %c0_i32_0 = arith.constant 0 : i32
    %c0_i32_1 = arith.constant 0 : i32
    return %c0_i32, %c0_i32_0 : i32, i32
  }
  func.func @transform_5(%arg0: i32, %arg1: i32) -> (i32, i32) {
    %c0_i32 = arith.constant 0 : i32
    %c0_i32_0 = arith.constant 0 : i32
    return %arg0, %c0_i32 : i32, i32
  }
}

</mosaic_0001>

<llo_original>
// kernel: tpu_custom_call.1
$region0: #{tpu_custom_call.1}
  #allocation0 [shape = 'u32[]', space=smem, size = 0x4, offset = 0x4, fixed_abs, tag = 'smem constant byte address 0x4 - core index']
  #allocation1 [shape = 'u32[144,128]{1,0:T(1,128)}', space=vmem, size = 0x12000, scoped, tag = 'internal scratch']
  %s0 = inlined_call_operand.vmem [shape: f32[16,64], index: 0, kind: input, shape index: {}]
  %s1 = inlined_call_operand.vmem [shape: bf16[64,256], index: 1, kind: input, shape index: {}]
  %s2 = inlined_call_operand.vmem [shape: f32[1,256], index: 2, kind: input, shape index: {}]
  %s3 = inlined_call_operand.vmem [shape: bf16[256,64], index: 3, kind: input, shape index: {}]
  %s4 = inlined_call_operand.vmem [shape: f32[1,64], index: 4, kind: input, shape index: {}]
  %s5 = inlined_call_operand.hbm [shape: f32[16,64], index: 5, kind: output, shape index: {}]
  %s6 = sld [smem:[#allocation0]]
  $region102: #{tpu_custom_call.1} parent=0
    _
  %s8 = ssub.s32 1, %s6
  %s9 = scalar_select 0, %s8, %s6
  $region1: #{tpu_custom_call.1} parent=0
    #allocation2 [shape = 'u8[32768]{0}', space=vmem, size = 0x8000, scoped, tag = 'input window, operand 1']
    #allocation3 [shape = 'u8[8192]{0}', space=vmem, size = 0x2000, scoped, tag = 'output window, operand 0']
    #allocation4 [shape = 's32[2]{0}', space=sflag, size = 0x8, scoped, tag = 'scoped memory for tpu_custom_call.1']
    %10 = vsyncpa [#allocation4], 0
    %s11 = scalar_lea.sflag [#allocation4], 1
    %12 = vsyncpa %s11, 0
    loop: start=0, step=1, limit=6
    $region2: #{tpu_custom_call.1} parent=1 // loop_pre_header
      _
    $region3: #{tpu_custom_call.1} parent=1 // loop_header
      %s14 = sphi 0, %s18
      %p15 = scmp.ge.s32.totalorder %s14, 6
      %s21 = sphi 0, %s33
      %s22 = sphi 0, %s29
      %s23 = sphi 0, %s21
      %s24 = sphi 0, %s22
      %s25 = sphi 0, %s23
      %s26 = sphi 0, %s24
      %s36 = sphi 0, %s38
      %s39 = sphi 0, %s36
      %s40 = sphi 0, %s39
      %s56 = sphi 0, %s40
      %s62 = sphi 0, %s64
      %s65 = sphi 0, %s62
      %s66 = sphi 0, %s65
      %s82 = sphi 0, %s66
      %s88 = sphi 0, %s90
      %s91 = sphi 0, %s88
      %s92 = sphi 0, %s91
      %s108 = sphi 0, %s92
      %s114 = sphi 0, %s116
      %s117 = sphi 0, %s114
      %s118 = sphi 0, %s117
      %s134 = sphi 0, %s118
      %s138 = sphi 0, %s138
      %s140 = sphi 0, %s138
      %s141 = sphi 0, %s140
      %s155 = sphi 0, %s141
      %s161 = sphi 0, %s163
      %s164 = sphi 0, %s161
      %s165 = sphi 0, %s164
      %s181 = sphi 0, %s165
    $region4: #{tpu_custom_call.1} parent=1 // loop_header_branch
      %17 = sbr.rel (%p15) target = $region8
    $region5: #{tpu_custom_call.1} parent=1 // loop_body
      %s19 = ssub.s32 %s14, 1
      %s20 = ssub.s32 %s14, 2
      %s27 = sadd.s32 1, %s22
      %p28 = scmp.ge.s32.totalorder %s27, 2
      %s29 = scalar_select %p28, 0, %s27
      %s30 = sadd.s32 1, %s21
      %s31 = scalar_select %p28, %s30, %s21
      %p32 = scmp.ge.s32.totalorder %s31, 2
      %s33 = scalar_select %p32, 0, %s31
      %s34 = ssub.s32 %s21, %s33
      %p35 = scmp.eq.s32.totalorder %s34, 0
      %s37 = sadd.s32 %s36, 1
      %s38 = scalar_select %p35, %s36, %s37
      %p41 = pneg %p35
      %p42 = scmp.eq.s32.totalorder %s14, 3
      %p43 = por %p41, %p42
      %p44 = scmp.ne.s32.totalorder %s36, %s39
      %p45 = scmp.eq.s32.totalorder %s14, 0
      %p46 = por %p44, %p45
      %p47 = scmp.ne.s32.totalorder %s36, %s39
      %p48 = scmp.eq.s32.totalorder %s19, 3
      %p49 = por %p47, %p48
      %p50 = scmp.ne.s32.totalorder %s39, %s40
      %p51 = scmp.eq.s32.totalorder %s19, 0
      %p52 = por %p50, %p51
      %p53 = scmp.ne.s32.totalorder %s39, %s40
      %p54 = scmp.eq.s32.totalorder %s20, 3
      %p55 = por %p53, %p54
      %p57 = scmp.ne.s32.totalorder %s40, %s56
      %p58 = scmp.eq.s32.totalorder %s20, 0
      %p59 = por %p57, %p58
      %s60 = ssub.s32 %s22, %s29
      %p61 = scmp.eq.s32.totalorder %s60, 0
      %s63 = sadd.s32 %s62, 1
      %s64 = scalar_select %p61, %s62, %s63
      %p67 = pneg %p61
      %p68 = scmp.eq.s32.totalorder %s14, 3
      %p69 = por %p67, %p68
      %p70 = scmp.ne.s32.totalorder %s62, %s65
      %p71 = scmp.eq.s32.totalorder %s14, 0
      %p72 = por %p70, %p71
      %p73 = scmp.ne.s32.totalorder %s62, %s65
      %p74 = scmp.eq.s32.totalorder %s19, 3
      %p75 = por %p73, %p74
      %p76 = scmp.ne.s32.totalorder %s65, %s66
      %p77 = scmp.eq.s32.totalorder %s19, 0
      %p78 = por %p76, %p77
      %p79 = scmp.ne.s32.totalorder %s65, %s66
      %p80 = scmp.eq.s32.totalorder %s20, 3
      %p81 = por %p79, %p80
      %p83 = scmp.ne.s32.totalorder %s66, %s82
      %p84 = scmp.eq.s32.totalorder %s20, 0
      %p85 = por %p83, %p84
      %s86 = ssub.s32 %s22, %s29
      %p87 = scmp.eq.s32.totalorder %s86, 0
      %s89 = sadd.s32 %s88, 1
      %s90 = scalar_select %p87, %s88, %s89
      %p93 = pneg %p87
      %p94 = scmp.eq.s32.totalorder %s14, 3
      %p95 = por %p93, %p94
      %p96 = scmp.ne.s32.totalorder %s88, %s91
      %p97 = scmp.eq.s32.totalorder %s14, 0
      %p98 = por %p96, %p97
      %p99 = scmp.ne.s32.totalorder %s88, %s91
      %p100 = scmp.eq.s32.totalorder %s19, 3
      %p101 = por %p99, %p100
      %p102 = scmp.ne.s32.totalorder %s91, %s92
      %p103 = scmp.eq.s32.totalorder %s19, 0
      %p104 = por %p102, %p103
      %p105 = scmp.ne.s32.totalorder %s91, %s92
      %p106 = scmp.eq.s32.totalorder %s20, 3
      %p107 = por %p105, %p106
      %p109 = scmp.ne.s32.totalorder %s92, %s108
      %p110 = scmp.eq.s32.totalorder %s20, 0
      %p111 = por %p109, %p110
      %s112 = ssub.s32 %s22, %s29
      %p113 = scmp.eq.s32.totalorder %s112, 0
      %s115 = sadd.s32 %s114, 1
      %s116 = scalar_select %p113, %s114, %s115
      %p119 = pneg %p113
      %p120 = scmp.eq.s32.totalorder %s14, 3
      %p121 = por %p119, %p120
      %p122 = scmp.ne.s32.totalorder %s114, %s117
      %p123 = scmp.eq.s32.totalorder %s14, 0
      %p124 = por %p122, %p123
      %p125 = scmp.ne.s32.totalorder %s114, %s117
      %p126 = scmp.eq.s32.totalorder %s19, 3
      %p127 = por %p125, %p126
      %p128 = scmp.ne.s32.totalorder %s117, %s118
      %p129 = scmp.eq.s32.totalorder %s19, 0
      %p130 = por %p128, %p129
      %p131 = scmp.ne.s32.totalorder %s117, %s118
      %p132 = scmp.eq.s32.totalorder %s20, 3
      %p133 = por %p131, %p132
      %p135 = scmp.ne.s32.totalorder %s118, %s134
      %p136 = scmp.eq.s32.totalorder %s20, 0
      %p137 = por %p135, %p136
      %s139 = sadd.s32 %s138, 1
      %p142 = scmp.eq.s32.totalorder %s14, 3
      %p143 = scmp.ne.s32.totalorder %s138, %s140
      %p144 = scmp.eq.s32.totalorder %s14, 0
      %p145 = por %p143, %p144
      %p146 = scmp.ne.s32.totalorder %s138, %s140
      %p147 = scmp.eq.s32.totalorder %s19, 3
      %p148 = por %p146, %p147
      %p149 = scmp.ne.s32.totalorder %s140, %s141
      %p150 = scmp.eq.s32.totalorder %s19, 0
      %p151 = por %p149, %p150
      %p152 = scmp.ne.s32.totalorder %s140, %s141
      %p153 = scmp.eq.s32.totalorder %s20, 3
      %p154 = por %p152, %p153
      %p156 = scmp.ne.s32.totalorder %s141, %s155
      %p157 = scmp.eq.s32.totalorder %s20, 0
      %p158 = por %p156, %p157
      %s159 = ssub.s32 %s21, %s33
      %p160 = scmp.eq.s32.totalorder %s159, 0
      %s162 = sadd.s32 %s161, 1
      %s163 = scalar_select %p160, %s161, %s162
      %p166 = pneg %p160
      %p167 = scmp.eq.s32.totalorder %s14, 3
      %p168 = por %p166, %p167
      %p169 = scmp.ne.s32.totalorder %s161, %s164
      %p170 = scmp.eq.s32.totalorder %s14, 0
      %p171 = por %p169, %p170
      %p172 = scmp.ne.s32.totalorder %s161, %s164
      %p173 = scmp.eq.s32.totalorder %s19, 3
      %p174 = por %p172, %p173
      %p175 = scmp.ne.s32.totalorder %s164, %s165
      %p176 = scmp.eq.s32.totalorder %s19, 0
      %p177 = por %p175, %p176
      %p178 = scmp.ne.s32.totalorder %s164, %s165
      %p179 = scmp.eq.s32.totalorder %s20, 3
      %p180 = por %p178, %p179
      %p182 = scmp.ne.s32.totalorder %s165, %s181
      %p183 = scmp.eq.s32.totalorder %s20, 0
      %p184 = por %p182, %p183
      %p185 = scmp.le.s32.totalorder 1, %s14
      %p186 = scmp.lt.s32.totalorder %s14, 5
      %p187 = pnand %p185, %p186
      %p188 = pneg %p187
      // Predicated region
      $region9: #{tpu_custom_call.1} parent=5 // pred_check
        _
      $region10: #{tpu_custom_call.1} parent=5 // pred_check_branch
        %190 = sbr.rel (%p187) target = $region12
      $region11: #{tpu_custom_call.1} parent=5 // pred_region
        %s191 = ssub.s32 %s14, 1
        // Predicated region
        $region13: #{tpu_custom_call.1} parent=11 // pred_check
          %p192 = pneg %p151
        $region14: #{tpu_custom_call.1} parent=11 // pred_check_branch
          %194 = sbr.rel (%p192) target = $region16
        $region15: #{tpu_custom_call.1} parent=11 // pred_region
          _
        $region16: #{tpu_custom_call.1} parent=11 // pred_fallthru
          _
      $region12: #{tpu_custom_call.1} parent=5 // pred_fallthru
        _
      %p195 = scmp.lt.s32.totalorder %s14, 4
      // Predicated region
      $region17: #{tpu_custom_call.1} parent=5 // pred_check
        %p196 = pneg %p195
      $region18: #{tpu_custom_call.1} parent=5 // pred_check_branch
        %198 = sbr.rel (%p196) target = $region20
      $region19: #{tpu_custom_call.1} parent=5 // pred_region
        // Predicated region
        $region21: #{tpu_custom_call.1} parent=19 // pred_check
          %p199 = pneg %p46
        $region22: #{tpu_custom_call.1} parent=19 // pred_check_branch
          %201 = sbr.rel (%p199) target = $region24
        $region23: #{tpu_custom_call.1} parent=19 // pred_region
          %p202 = scmp.lt.s32.totalorder %s21, 1
          %s203 = scalar_select %p202, %s21, 1
          %s204 = smul.addr %s203, 8
          %s205 = scalar_lea.vmem %s0, %s204
        $region24: #{tpu_custom_call.1} parent=19 // pred_fallthru
          _
        // Predicated region
        $region25: #{tpu_custom_call.1} parent=19 // pred_check
          %p206 = pneg %p72
        $region26: #{tpu_custom_call.1} parent=19 // pred_check_branch
          %208 = sbr.rel (%p206) target = $region28
        $region27: #{tpu_custom_call.1} parent=19 // pred_region
          %s209 = sand.u32 %s62, 1
          %s210 = sand.u32 %s62, 1
          %s211 = smul.addr %s210, 32
          %s212 = scalar_lea.vmem [#allocation2], %s211
          %s213 = smul.addr %s22, 4
          %s214 = scalar_lea.vmem %s1, %s213
          // Predicated region
          $region29: #{tpu_custom_call.1} parent=27 // pred_check
            _
          $region30: #{tpu_custom_call.1} parent=27 // pred_check_branch
            %216 = sbr.rel (0) target = $region32
          $region31: #{tpu_custom_call.1} parent=27 // pred_region
            // Predicated region
            $region33: #{tpu_custom_call.1} parent=31 // pred_check
              _
            $region34: #{tpu_custom_call.1} parent=31 // pred_check_branch
              %218 = sbr.rel target = $region36
            $region35: #{tpu_custom_call.1} parent=31 // pred_region
              // Predicated region
              $region48: #{tpu_custom_call.1} parent=35 // pred_check
                _
              $region49: #{tpu_custom_call.1} parent=35 // pred_check_branch
                %248 = sbr.rel (0) target = $region51
              $region50: #{tpu_custom_call.1} parent=35 // pred_region
                loop: start=0, step=1, limit=1
                $region52: #{tpu_custom_call.1} parent=50 // loop_pre_header
                  _
                $region53: #{tpu_custom_call.1} parent=50 // loop_header
                  %s250 = sphi 0, %s254
                  %p251 = scmp.ge.s32.totalorder %s250, 1
                  %s255 = sphi %s214, %s214
                  %s256 = sphi %s212, %s212
                $region54: #{tpu_custom_call.1} parent=50 // loop_header_branch
                  %253 = sbr.rel (%p251) target = $region58
                $region55: #{tpu_custom_call.1} parent=50 // loop_body
                  _
                $region56: #{tpu_custom_call.1} parent=50 // loop_footer
                  %s254 = sadd.s32 1, %s250
                $region57: #{tpu_custom_call.1} parent=50 // loop_footer_branch
                  %249 = sbr.rel target = $region53
                $region58: #{tpu_custom_call.1} parent=50 // loop_exit
                  _
                %s258 = ssub.s32 16, 1
                loop: start=0, step=1, limit=1
                $region59: #{tpu_custom_call.1} parent=50 // loop_pre_header
                  _
                $region60: #{tpu_custom_call.1} parent=50 // loop_header
                  %s260 = sphi 0, %s264
                  %p261 = scmp.ge.s32.totalorder %s260, 1
                  %s265 = sphi %s214, %s214
                  %s266 = sphi %s212, %s212
                $region61: #{tpu_custom_call.1} parent=50 // loop_header_branch
                  %263 = sbr.rel (%p261) target = $region65
                $region62: #{tpu_custom_call.1} parent=50 // loop_body
                  %v267 = vld [vmem:[%s265] sm:%s258]
                  %268 = vst [vmem:[%s266] sm:%s258] %v267
                  %v269 = vld [vmem:[%s265 + $0x8] sm:%s258]
                  %270 = vst [vmem:[%s266 + $0x4] sm:%s258] %v269
                  %v271 = vld [vmem:[%s265 + $0x10] sm:%s258]
                  %272 = vst [vmem:[%s266 + $0x8] sm:%s258] %v271
                  %v273 = vld [vmem:[%s265 + $0x18] sm:%s258]
                  %274 = vst [vmem:[%s266 + $0xc] sm:%s258] %v273
                  %v275 = vld [vmem:[%s265 + $0x20] sm:%s258]
                  %276 = vst [vmem:[%s266 + $0x10] sm:%s258] %v275
                  %v277 = vld [vmem:[%s265 + $0x28] sm:%s258]
                  %278 = vst [vmem:[%s266 + $0x14] sm:%s258] %v277
                  %v279 = vld [vmem:[%s265 + $0x30] sm:%s258]
                  %280 = vst [vmem:[%s266 + $0x18] sm:%s258] %v279
                  %v281 = vld [vmem:[%s265 + $0x38] sm:%s258]
                  %282 = vst [vmem:[%s266 + $0x1c] sm:%s258] %v281
                $region63: #{tpu_custom_call.1} parent=50 // loop_footer
                  %s264 = sadd.s32 1, %s260
                $region64: #{tpu_custom_call.1} parent=50 // loop_footer_branch
                  %259 = sbr.rel target = $region60
                $region65: #{tpu_custom_call.1} parent=50 // loop_exit
                  _
              $region51: #{tpu_custom_call.1} parent=35 // pred_fallthru
                _
            $region36: #{tpu_custom_call.1} parent=31 // pred_fallthru
              _
            // Predicated region
            $region37: #{tpu_custom_call.1} parent=31 // pred_check
              _
            $region38: #{tpu_custom_call.1} parent=31 // pred_check_branch
              %220 = sbr.rel (0) target = $region40
            $region39: #{tpu_custom_call.1} parent=31 // pred_region
              %s222 = ssub.s32 16, 1
              loop: start=0, step=1, limit=1
              $region41: #{tpu_custom_call.1} parent=39 // loop_pre_header
                _
              $region42: #{tpu_custom_call.1} parent=39 // loop_header
                %s224 = sphi 0, %s228
                %p225 = scmp.ge.s32.totalorder %s224, 1
                %s229 = sphi %s214, %s214
                %s230 = sphi %s212, %s212
              $region43: #{tpu_custom_call.1} parent=39 // loop_header_branch
                %227 = sbr.rel (%p225) target = $region47
              $region44: #{tpu_custom_call.1} parent=39 // loop_body
                %v231 = vld [vmem:[%s229] sm:%s222]
                %232 = vst [vmem:[%s230] sm:%s222] %v231
                %v233 = vld [vmem:[%s229 + $0x8] sm:%s222]
                %234 = vst [vmem:[%s230 + $0x4] sm:%s222] %v233
                %v235 = vld [vmem:[%s229 + $0x10] sm:%s222]
                %236 = vst [vmem:[%s230 + $0x8] sm:%s222] %v235
                %v237 = vld [vmem:[%s229 + $0x18] sm:%s222]
                %238 = vst [vmem:[%s230 + $0xc] sm:%s222] %v237
                %v239 = vld [vmem:[%s229 + $0x20] sm:%s222]
                %240 = vst [vmem:[%s230 + $0x10] sm:%s222] %v239
                %v241 = vld [vmem:[%s229 + $0x28] sm:%s222]
                %242 = vst [vmem:[%s230 + $0x14] sm:%s222] %v241
                %v243 = vld [vmem:[%s229 + $0x30] sm:%s222]
                %244 = vst [vmem:[%s230 + $0x18] sm:%s222] %v243
                %v245 = vld [vmem:[%s229 + $0x38] sm:%s222]
                %246 = vst [vmem:[%s230 + $0x1c] sm:%s222] %v245
              $region45: #{tpu_custom_call.1} parent=39 // loop_footer
                %s228 = sadd.s32 1, %s224
              $region46: #{tpu_custom_call.1} parent=39 // loop_footer_branch
                %223 = sbr.rel target = $region42
              $region47: #{tpu_custom_call.1} parent=39 // loop_exit
                _
            $region40: #{tpu_custom_call.1} parent=31 // pred_fallthru
              _
          $region32: #{tpu_custom_call.1} parent=27 // pred_fallthru
            _
          %283 = vnop
        $region28: #{tpu_custom_call.1} parent=19 // pred_fallthru
          _
        // Predicated region
        $region66: #{tpu_custom_call.1} parent=19 // pred_check
          %p284 = pneg %p98
        $region67: #{tpu_custom_call.1} parent=19 // pred_check_branch
          %286 = sbr.rel (%p284) target = $region69
        $region68: #{tpu_custom_call.1} parent=19 // pred_region
          %p287 = scmp.lt.s32.totalorder %s22, 1
          %s288 = scalar_select %p287, %s22, 1
          %s289 = scalar_lea.vmem %s2, %s288
        $region69: #{tpu_custom_call.1} parent=19 // pred_fallthru
          _
        // Predicated region
        $region70: #{tpu_custom_call.1} parent=19 // pred_check
          %p290 = pneg %p124
        $region71: #{tpu_custom_call.1} parent=19 // pred_check_branch
          %292 = sbr.rel (%p290) target = $region73
        $region72: #{tpu_custom_call.1} parent=19 // pred_region
          %s293 = smul.u32 16, %s22
          %p294 = scmp.lt.s32.totalorder %s293, 31
          %s295 = scalar_select %p294, %s293, 31
          %s296 = smul.addr %s295, 4
          %s297 = scalar_lea.vmem %s3, %s296
          %s298 = smul.u32 16, %s22
        $region73: #{tpu_custom_call.1} parent=19 // pred_fallthru
          _
      $region20: #{tpu_custom_call.1} parent=5 // pred_fallthru
        _
      %p299 = scmp.le.s32.totalorder 1, %s14
      %p300 = scmp.lt.s32.totalorder %s14, 5
      %p301 = pnand %p299, %p300
      %p302 = pneg %p301
      // Predicated region
      $region74: #{tpu_custom_call.1} parent=5 // pred_check
        _
      $region75: #{tpu_custom_call.1} parent=5 // pred_check_branch
        %304 = sbr.rel (%p301) target = $region77
      $region76: #{tpu_custom_call.1} parent=5 // pred_region
        %s305 = ssub.s32 %s14, 1
        %s306 = sand.u32 %s65, 1
        %s307 = sand.u32 %s65, 1
        %s308 = smul.addr %s307, 32
        %s309 = scalar_lea.vmem [#allocation2], %s308
        // Predicated region
        $region78: #{tpu_custom_call.1} parent=76 // pred_check
          %p310 = pneg %p78
        $region79: #{tpu_custom_call.1} parent=76 // pred_check_branch
          %312 = sbr.rel (%p310) target = $region81
        $region80: #{tpu_custom_call.1} parent=76 // pred_region
          _
        $region81: #{tpu_custom_call.1} parent=76 // pred_fallthru
          _
        %p313 = scmp.lt.s32.totalorder %s23, 1
        %s314 = scalar_select %p313, %s23, 1
        %s315 = smul.addr %s314, 8
        %s316 = scalar_lea.vmem %s0, %s315
        %p317 = pneg %p52
        %p318 = pneg %p49
        %s319 = sand.u32 %s65, 1
        %s320 = sand.u32 %s65, 1
        %s321 = smul.addr %s320, 32
        %s322 = scalar_lea.vmem [#allocation2], %s321
        %p323 = pneg %p78
        %p324 = pneg %p75
        %p325 = scmp.lt.s32.totalorder %s24, 1
        %s326 = scalar_select %p325, %s24, 1
        %s327 = scalar_lea.vmem %s2, %s326
        %p328 = pneg %p104
        %p329 = pneg %p101
        %s330 = smul.u32 16, %s24
        %p331 = scmp.lt.s32.totalorder %s330, 31
        %s332 = scalar_select %p331, %s330, 31
        %s333 = smul.addr %s332, 4
        %s334 = scalar_lea.vmem %s3, %s333
        %p335 = pneg %p130
        %p336 = pneg %p127
        %p337 = pneg %p151
        %p338 = pneg %p148
        %p339 = pneg %p177
        %p340 = pneg %p174
        %s341 = sand.u32 %s164, 1
        %s342 = scalar_lea.sflag [#allocation4], %s341
        %s343 = sand.u32 %s164, 1
        %s344 = smul.addr %s343, 8
        %s345 = scalar_lea.vmem [#allocation3], %s344
        %p346 = scmp.lt.s32.totalorder %s23, 1
        %s347 = scalar_select %p346, %s23, 1
        %s348 = smul.addr %s347, 8
        %s349 = scalar_lea.vmem %s0, %s348
        %p350 = scmp.lt.s32.totalorder %s24, 1
        %s351 = scalar_select %p350, %s24, 1
        %s352 = scalar_lea.vmem %s2, %s351
        %s353 = smul.u32 16, %s24
        %p354 = scmp.lt.s32.totalorder %s353, 31
        %s355 = scalar_select %p354, %s353, 31
        %s356 = smul.addr %s355, 4
        %s357 = scalar_lea.vmem %s3, %s356
        %s358 = smul.u32 16, %s24
        %p360 = scmp.eq.s32.totalorder %s24, 0
        // Predicated region
        $region82: #{tpu_custom_call.1} parent=76 // pred_check
          %p361 = pneg %p360
        $region83: #{tpu_custom_call.1} parent=76 // pred_check_branch
          %363 = sbr.rel (%p361) target = $region85
        $region84: #{tpu_custom_call.1} parent=76 // pred_region
          %vm364 = vcmask 523264
          %365 = vst.msk [vmem:[%s345] sm:$0xff] %vm364, 0.0
        $region85: #{tpu_custom_call.1} parent=76 // pred_fallthru
          _
        %v366 = vld [vmem:[%s349] sm:$0xff]
        %v367 = vpack.c.bf16 %v366, %v366
        %v368 = vld [vmem:[%s309] sm:$0xf]
        %v369 = vld [vmem:[%s309 + $0x4] sm:$0xf]
        %v370 = vld [vmem:[%s309 + $0x8] sm:$0xf]
        %v371 = vld [vmem:[%s309 + $0xc] sm:$0xf]
        %v372 = vld [vmem:[%s309 + $0x10] sm:$0xf]
        %v373 = vld [vmem:[%s309 + $0x14] sm:$0xf]
        %v374 = vld [vmem:[%s309 + $0x18] sm:$0xf]
        %v375 = vld [vmem:[%s309 + $0x1c] sm:$0xf]
        %v376 = vld [vmem:[%s352] sm:$0x1]
        %v378 = vlaneseq
        %v379 = vshrl.u32 %v378, 7
        %v380 = vsub.s32 0, %v379
        %v381 = vrot.slane %v376, %v380
        %v391 = vunpack.c.l.b16 %v368
        %v392 = vunpack.c.l.b16 %v369
        %v393 = vunpack.c.l.b16 %v370
        %v394 = vunpack.c.l.b16 %v371
        %v395 = vunpack.c.l.b16 %v372
        %v396 = vunpack.c.l.b16 %v373
        %v397 = vunpack.c.l.b16 %v374
        %v398 = vunpack.c.l.b16 %v375
        %v399 = vpack.c.b16 %v392, %v391
        %v400 = vpack.c.b16 %v394, %v393
        %v401 = vpack.c.b16 %v396, %v395
        %v402 = vpack.c.b16 %v398, %v397
        %vm407 = vcmask 523264
        %v409 = vsel %vm407, %v367, 0
        %411 = vmatprep.subr.bf16.mxu0 0
        %412 = vmatpush1.bf16.msra.mxu0 0
        %413 = vmatprep.subr.bf16.mxu0 0
        %414 = vmatpush1.bf16.msra.mxu0 0
        %415 = vmatprep.subr.bf16.mxu0 0
        %416 = vmatpush1.bf16.msra.mxu0 0
        %417 = vmatprep.subr.bf16.mxu0 0
        %418 = vmatpush1.bf16.msra.mxu0 0
        %419 = vmatprep.subr.bf16.mxu0 0
        %420 = vmatpush1.bf16.msra.mxu0 %v402
        %421 = vmatprep.subr.bf16.mxu0 0
        %422 = vmatpush1.bf16.msra.mxu0 %v401
        %423 = vmatprep.subr.bf16.mxu0 0
        %424 = vmatpush1.bf16.msra.mxu0 %v400
        %425 = vmatprep.subr.bf16.mxu0 0
        %426 = vmatpush1.bf16.msra.mxu0 %v399
        %427 = vmatprep.subr.bf16.mxu0 0
        %428 = vmatpush2.bf16.msra.mxu0 0
        %429 = vmatprep.subr.bf16.mxu0 0
        %430 = vmatpush2.bf16.msra.mxu0 0
        %431 = vmatprep.subr.bf16.mxu0 0
        %432 = vmatpush2.bf16.msra.mxu0 0
        %433 = vmatprep.subr.bf16.mxu0 0
        %434 = vmatpush2.bf16.msra.mxu0 0
        %435 = vmatprep.subr.bf16.mxu0 0
        %436 = vmatpush2.bf16.msra.mxu0 0
        %437 = vmatprep.subr.bf16.mxu0 0
        %438 = vmatpush2.bf16.msra.mxu0 0
        %439 = vmatprep.subr.bf16.mxu0 0
        %440 = vmatpush2.bf16.msra.mxu0 0
        %441 = vmatprep.subr.bf16.mxu0 0
        %442 = vmatpush2.bf16.msra.mxu0 0
        %443 = vmatprep.mubr.bf16.mxu0 0
        %444 = vmatmul.mubr.bf16.gmra.mxu0 %v409
        %v445 = vpop.f32.mrf.mxu0
        %v446 = vadd.f32 %v381, %v445
        %v447 = vpop.f32.mrf.mxu0
        %v448 = vpop.f32.mrf.mxu0
        %v449 = vpop.f32.mrf.mxu0
        %450 = vdwg.mxu0
        %v451 = vmul.f32 %v446, 0.5
        %v452 = vmul.f32 %v446, 0.044715
        %v453 = vmul.f32 %v452, %v446
        %v454 = vmul.f32 %v453, %v446
        %v455 = vadd.f32 %v446, %v454
        %v456 = vmul.f32 %v455, 0.7978846
        %v457 = vtanh.pop %v456
        %v458 = vadd.f32 %v457, 1.0
        %v459 = vmul.f32 %v451, %v458
        %v460 = vld [vmem:[%s345] sm:$0xff]
        %v461 = vpack.c.bf16 %v459, %v459
        %v462 = vld [vmem:[%s357] sm:$0xf]
        %v463 = vld [vmem:[%s357 + $0x4] sm:$0xf]
        %v464 = vld [vmem:[%s357 + $0x8] sm:$0xf]
        %v465 = vld [vmem:[%s357 + $0xc] sm:$0xf]
        %v466 = vld [vmem:[%s357 + $0x10] sm:$0xf]
        %v467 = vld [vmem:[%s357 + $0x14] sm:$0xf]
        %v468 = vld [vmem:[%s357 + $0x18] sm:$0xf]
        %v469 = vld [vmem:[%s357 + $0x1c] sm:$0xf]
        %v470 = vld [vmem:[%s357 + $0x20] sm:$0xf]
        %v471 = vld [vmem:[%s357 + $0x24] sm:$0xf]
        %v472 = vld [vmem:[%s357 + $0x28] sm:$0xf]
        %v473 = vld [vmem:[%s357 + $0x2c] sm:$0xf]
        %v474 = vld [vmem:[%s357 + $0x30] sm:$0xf]
        %v475 = vld [vmem:[%s357 + $0x34] sm:$0xf]
        %v476 = vld [vmem:[%s357 + $0x38] sm:$0xf]
        %v477 = vld [vmem:[%s357 + $0x3c] sm:$0xf]
        %v494 = vunpack.c.l.b16 %v462
        %v495 = vunpack.c.l.b16 %v463
        %v496 = vunpack.c.l.b16 %v464
        %v497 = vunpack.c.l.b16 %v465
        %v498 = vunpack.c.l.b16 %v466
        %v499 = vunpack.c.l.b16 %v467
        %v500 = vunpack.c.l.b16 %v468
        %v501 = vunpack.c.l.b16 %v469
        %v502 = vunpack.c.l.b16 %v470
        %v503 = vunpack.c.l.b16 %v471
        %v504 = vunpack.c.l.b16 %v472
        %v505 = vunpack.c.l.b16 %v473
        %v506 = vunpack.c.l.b16 %v474
        %v507 = vunpack.c.l.b16 %v475
        %v508 = vunpack.c.l.b16 %v476
        %v509 = vunpack.c.l.b16 %v477
        %v510 = vpack.c.b16 %v495, %v494
        %v511 = vpack.c.b16 %v497, %v496
        %v512 = vpack.c.b16 %v499, %v498
        %v513 = vpack.c.b16 %v501, %v500
        %v514 = vpack.c.b16 %v503, %v502
        %v515 = vpack.c.b16 %v505, %v504
        %v516 = vpack.c.b16 %v507, %v506
        %v517 = vpack.c.b16 %v509, %v508
        %526 = vmatprep.subr.bf16.mxu0 0
        %527 = vmatpush1.bf16.msra.mxu0 %v517
        %528 = vmatprep.subr.bf16.mxu0 0
        %529 = vmatpush1.bf16.msra.mxu0 %v516
        %530 = vmatprep.subr.bf16.mxu0 0
        %531 = vmatpush1.bf16.msra.mxu0 %v515
        %532 = vmatprep.subr.bf16.mxu0 0
        %533 = vmatpush1.bf16.msra.mxu0 %v514
        %534 = vmatprep.subr.bf16.mxu0 0
        %535 = vmatpush1.bf16.msra.mxu0 %v513
        %536 = vmatprep.subr.bf16.mxu0 0
        %537 = vmatpush1.bf16.msra.mxu0 %v512
        %538 = vmatprep.subr.bf16.mxu0 0
        %539 = vmatpush1.bf16.msra.mxu0 %v511
        %540 = vmatprep.subr.bf16.mxu0 0
        %541 = vmatpush1.bf16.msra.mxu0 %v510
        %542 = vmatprep.subr.bf16.mxu0 0
        %543 = vmatpush2.bf16.msra.mxu0 0
        %544 = vmatprep.subr.bf16.mxu0 0
        %545 = vmatpush2.bf16.msra.mxu0 0
        %546 = vmatprep.subr.bf16.mxu0 0
        %547 = vmatpush2.bf16.msra.mxu0 0
        %548 = vmatprep.subr.bf16.mxu0 0
        %549 = vmatpush2.bf16.msra.mxu0 0
        %550 = vmatprep.subr.bf16.mxu0 0
        %551 = vmatpush2.bf16.msra.mxu0 0
        %552 = vmatprep.subr.bf16.mxu0 0
        %553 = vmatpush2.bf16.msra.mxu0 0
        %554 = vmatprep.subr.bf16.mxu0 0
        %555 = vmatpush2.bf16.msra.mxu0 0
        %556 = vmatprep.subr.bf16.mxu0 0
        %557 = vmatpush2.bf16.msra.mxu0 0
        %558 = vmatprep.mubr.bf16.mxu0 0
        %559 = vmatmul.mubr.bf16.gmra.mxu0 %v461
        %v560 = vpop.f32.mrf.mxu0
        %v561 = vadd.f32 0.0, %v560
        %v562 = vpop.f32.mrf.mxu0
        %v563 = vpop.f32.mrf.mxu0
        %v564 = vpop.f32.mrf.mxu0
        %565 = vdwg.mxu0
        %v566 = vadd.f32 %v460, %v561
        %567 = vst.msk [vmem:[%s345] sm:$0xff] %vm407, %v566
        %p568 = scmp.eq.s32.totalorder %s24, 1
        // Predicated region
        $region86: #{tpu_custom_call.1} parent=76 // pred_check
          %p569 = pneg %p568
        $region87: #{tpu_custom_call.1} parent=76 // pred_check_branch
          %571 = sbr.rel (%p569) target = $region89
        $region88: #{tpu_custom_call.1} parent=76 // pred_region
          %v572 = vld [vmem:[%s345] sm:$0xff]
          %v573 = vld [vmem:[%s4] sm:$0x1]
          %v575 = vlaneseq
          %v576 = vshrl.u32 %v575, 7
          %v577 = vsub.s32 0, %v576
          %v578 = vrot.slane %v573, %v577
          %v580 = vadd.f32 %v572, %v578
          %581 = vst.msk [vmem:[%s345] sm:$0xff] %vm407, %v580
        $region89: #{tpu_custom_call.1} parent=76 // pred_fallthru
          _
        %s582 = sand.u32 %s164, 1
        %s583 = scalar_lea.sflag [#allocation4], %s582
        %s584 = sand.u32 %s164, 1
        %s585 = smul.addr %s584, 8
        %s586 = scalar_lea.vmem [#allocation3], %s585
        // Predicated region
        $region90: #{tpu_custom_call.1} parent=76 // pred_check
          %p587 = pneg %p174
        $region91: #{tpu_custom_call.1} parent=76 // pred_check_branch
          %589 = sbr.rel (%p587) target = $region93
        $region92: #{tpu_custom_call.1} parent=76 // pred_region
          %s591 = ssub.s32 128, 128
          %592 = vsyncadd %s583, %s591
          %s593 = smul.addr %s23, 128
          %s594 = scalar_lea.hbm %s5, %s593
          %s596 = sshll.u32 %s586, 4
          %s597 = int_to_ptr.vmem [resolvable:$true] %s596
          %599 = dma.vmem_to_hbm [thread:$0]  %s597, 128, %s594, %s583
        $region93: #{tpu_custom_call.1} parent=76 // pred_fallthru
          _
      $region77: #{tpu_custom_call.1} parent=5 // pred_fallthru
        _
      %p600 = scmp.le.s32.totalorder 2, %s14
      // Predicated region
      $region94: #{tpu_custom_call.1} parent=5 // pred_check
        %p601 = pneg %p600
      $region95: #{tpu_custom_call.1} parent=5 // pred_check_branch
        %603 = sbr.rel (%p601) target = $region97
      $region96: #{tpu_custom_call.1} parent=5 // pred_region
        %s604 = ssub.s32 %s14, 2
        // Predicated region
        $region98: #{tpu_custom_call.1} parent=96 // pred_check
          %p605 = pneg %p180
        $region99: #{tpu_custom_call.1} parent=96 // pred_check_branch
          %607 = sbr.rel (%p605) target = $region101
        $region100: #{tpu_custom_call.1} parent=96 // pred_region
          %s608 = sand.u32 %s165, 1
          %s609 = scalar_lea.sflag [#allocation4], %s608
          %s610 = sand.u32 %s165, 1
          %s611 = smul.addr %s610, 8
          %s612 = scalar_lea.vmem [#allocation3], %s611
          %613 = dma.done %s609, 128
        $region101: #{tpu_custom_call.1} parent=96 // pred_fallthru
          _
      $region97: #{tpu_custom_call.1} parent=5 // pred_fallthru
        _
    $region6: #{tpu_custom_call.1} parent=1 // loop_footer
      %s18 = sadd.s32 1, %s14
    $region7: #{tpu_custom_call.1} parent=1 // loop_footer_branch
      %13 = sbr.rel target = $region3
    $region8: #{tpu_custom_call.1} parent=1 // loop_exit
      _
    %614 = vsyncpa [#allocation4], 1
    %s615 = scalar_lea.sflag [#allocation4], 1
    %616 = vsyncpa %s615, 1

</llo_original>
